<compile_context>
chip_gen: v5e
topology: v5e:2x2
jax: 0.10.0
libtpu: 0.0.40
codegen_flags: <defaults>
</compile_context>

<pallas_src>
import jax
import jax.numpy as jnp
from jax.experimental import pallas as pl
from jax.experimental.pallas import tpu as pltpu

NEG_SLOPE = 0.01  # nn.LeakyReLU default negative_slope
HIDDEN = 256


def _leaky_relu(x):
    return jnp.where(x > 0, x, NEG_SLOPE * x)


def sdcq_critic_kernel(
    path_ref, errs_ref, points_ref, action_ref,
    w1_ref, b1_ref,
    w02_ref, b02_ref, w12_ref, b12_ref,
    w3_ref, b3_ref,
    out_ref,
):
    H = HIDDEN

    # Static row offsets of each input slab inside the fused W1 ([in_dim, 2H]).
    d0 = path_ref.shape[1]
    d1 = d0 + errs_ref.shape[1]
    d2 = d1 + points_ref.shape[1]
    d3 = d2 + action_ref.shape[1]

    # Layer 1: x @ W1 without materializing concat([path, errs, points, action]).
    h = (
        jnp.dot(path_ref[...], w1_ref[0:d0, :], preferred_element_type=jnp.float32)
        + jnp.dot(errs_ref[...], w1_ref[d0:d1, :], preferred_element_type=jnp.float32)
        + jnp.dot(points_ref[...], w1_ref[d1:d2, :], preferred_element_type=jnp.float32)
        + jnp.dot(action_ref[...], w1_ref[d2:d3, :], preferred_element_type=jnp.float32)
        + b1_ref[...]
    )
    h = _leaky_relu(h)

    # Layer 2: the two branch matmuls on their original (dense) 256x256 weights.
    # Lane slice of h at 256 is vreg-aligned.
    h1 = _leaky_relu(
        jnp.dot(h[:, :H], w02_ref[...], preferred_element_type=jnp.float32)
        + b02_ref[...]
    )
    h2 = _leaky_relu(
        jnp.dot(h[:, H:], w12_ref[...], preferred_element_type=jnp.float32)
        + b12_ref[...]
    )

    # Layer 3: block-diagonal [2H, 2] -> single [B, 2] output store
    # (w3[:H, 0] = w03, w3[H:, 1] = w13, everything else zero).
    out_ref[...] = (
        jnp.dot(h1, w3_ref[0:H, :], preferred_element_type=jnp.float32)
        + jnp.dot(h2, w3_ref[H:, :], preferred_element_type=jnp.float32)
        + b3_ref[...]
    )


def sdcq_critic_forward(path, errs, points, action, packed):
    """Fused twin-Q forward. `packed` comes from pack_params()."""
    B = path.shape[0]
    # Keep the batch sublane-aligned (multiple of 8); no-op for the demo shapes.
    Bp = max(8, ((B + 7) // 8) * 8)

    def pad(x):
        return x if x.shape[0] == Bp else jnp.pad(x, ((0, Bp - x.shape[0]), (0, 0)))

    vmem = pl.BlockSpec(memory_space=pltpu.MemorySpace.VMEM)

    out = pl.pallas_call(
        sdcq_critic_kernel,
        out_shape=jax.ShapeDtypeStruct((Bp, 2), jnp.float32),
        in_specs=[vmem] * 12,
        out_specs=vmem,
    )(
        pad(path), pad(errs), pad(points), pad(action),
        packed["w1"], packed["b1"],
        packed["w02"], packed["b02"],
        packed["w12"], packed["b12"],
        packed["w3"], packed["b3"],
    )
    out = out[:B]
    # Preserve the original (out1, out2) interface.
    return out[:, 0:1], out[:, 1:2]


def init_params(key, in_dim):
    # Deterministic synthetic init (PyTorch-Linear-style uniform +/- 1/sqrt(fan_in)).
    # Weights stored as [in_features, out_features] (transposed vs. PyTorch).
    def linear(key, fan_in, fan_out):
        kw, kb = jax.random.split(key)
        bound = 1.0 / jnp.sqrt(fan_in)
        w = jax.random.uniform(kw, (fan_in, fan_out), jnp.float32, -bound, bound)
        b = jax.random.uniform(kb, (1, fan_out), jnp.float32, -bound, bound)
        return w, b

    keys = jax.random.split(key, 6)
    w01, b01 = linear(keys[0], in_dim, HIDDEN)
    w02, b02 = linear(keys[1], HIDDEN, HIDDEN)
    w03, b03 = linear(keys[2], HIDDEN, 1)
    w11, b11 = linear(keys[3], in_dim, HIDDEN)
    w12, b12 = linear(keys[4], HIDDEN, HIDDEN)
    w13, b13 = linear(keys[5], HIDDEN, 1)
    return dict(w01=w01, b01=b01, w02=w02, b02=b02, w03=w03, b03=b03,
                w11=w11, b11=b11, w12=w12, b12=b12, w13=w13, b13=b13)


def pack_params(p):
    """Pack the 12 per-branch params into 10 fused arrays (done once, off the hot path)."""
    H = HIDDEN
    f32 = jnp.float32

    # Layer 1: horizontal concat -> [in_dim, 2H] (no zero padding, no wasted bytes).
    w1 = jnp.concatenate([p["w01"], p["w11"]], axis=1).astype(f32)
    b1 = jnp.concatenate([p["b01"], p["b11"]], axis=1).astype(f32)

    # Layer 2: keep the dense per-branch weights (block-diagonal fusion would
    # double both weight-DMA bytes and MXU MACs for zero benefit).
    w02 = p["w02"].astype(f32)
    b02 = p["b02"].astype(f32)
    w12 = p["w12"].astype(f32)
    b12 = p["b12"].astype(f32)

    # Layer 3: tiny block-diagonal [2H, 2] -> Q1 in column 0, Q2 in column 1.
    w3 = jnp.zeros((2 * H, 2), f32)
    w3 = w3.at[:H, 0:1].set(p["w03"]).at[H:, 1:2].set(p["w13"])
    b3 = jnp.concatenate([p["b03"], p["b13"]], axis=1).astype(f32)

    return dict(w1=w1, b1=b1, w02=w02, b02=b02, w12=w12, b12=b12, w3=w3, b3=b3)


def reference_forward(path, errs, points, action, params):
    """Unfused pure-JAX reference mirroring the PyTorch module structure."""
    x = jnp.concatenate([path, errs, points, action], axis=1)

    def branch(w1, b1, w2, b2, w3, b3):
        h = _leaky_relu(x @ w1 + b1)
        h = _leaky_relu(h @ w2 + b2)
        return h @ w3 + b3

    o1 = branch(params["w01"], params["b01"], params["w02"], params["b02"],
                params["w03"], params["b03"])
    o2 = branch(params["w11"], params["b11"], params["w12"], params["b12"],
                params["w13"], params["b13"])
    return o1, o2


if __name__ == "__main__":
    key = jax.random.PRNGKey(0)
    k_path, k_errs, k_points, k_action, k_params = jax.random.split(key, 5)

    # small shapes: batch=8; path=6, errs=2, points=6 features (state_dim=14), action_dim=2
    B = 8
    path = jax.random.normal(k_path, (B, 6), jnp.float32)
    errs = jax.random.normal(k_errs, (B, 2), jnp.float32)
    points = jax.random.normal(k_points, (B, 6), jnp.float32)
    action = jax.random.normal(k_action, (B, 2), jnp.float32)

    in_dim = 6 + 2 + 6 + 2  # state_dim + action_dim
    params = init_params(k_params, in_dim)
    packed = pack_params(params)

    out1, out2 = sdcq_critic_forward(path, errs, points, action, packed)
    out1 = jax.block_until_ready(out1)
    out2 = jax.block_until_ready(out2)

    ref1, ref2 = reference_forward(path, errs, points, action, params)
    assert out1.shape == (B, 1) and out2.shape == (B, 1)
    # Fused / split matmuls only differ from the reference by f32 accumulation order.
    assert jnp.allclose(out1, ref1, atol=1e-4, rtol=1e-4)
    assert jnp.allclose(out2, ref2, atol=1e-4, rtol=1e-4)

    print("KERNEL_OK")
</pallas_src>

<mosaic_0001>
module attributes {stable_mosaic.version = 11 : i64} {
  func.func @sdcq_critic_kernel(%arg0: memref<8x6xf32, #tpu.memory_space<vmem>>, %arg1: memref<8x2xf32, #tpu.memory_space<vmem>>, %arg2: memref<8x6xf32, #tpu.memory_space<vmem>>, %arg3: memref<8x2xf32, #tpu.memory_space<vmem>>, %arg4: memref<16x512xf32, #tpu.memory_space<vmem>>, %arg5: memref<1x512xf32, #tpu.memory_space<vmem>>, %arg6: memref<256x256xf32, #tpu.memory_space<vmem>>, %arg7: memref<1x256xf32, #tpu.memory_space<vmem>>, %arg8: memref<256x256xf32, #tpu.memory_space<vmem>>, %arg9: memref<1x256xf32, #tpu.memory_space<vmem>>, %arg10: memref<512x2xf32, #tpu.memory_space<vmem>>, %arg11: memref<1x2xf32, #tpu.memory_space<vmem>>, %arg12: memref<8x2xf32, #tpu.memory_space<vmem>>) attributes {dimension_semantics = [], scalar_prefetch = 0 : i64, scratch_operands = 0 : i64, tpu.core_type = #tpu.core_type<tc>} {
    %c0 = arith.constant 0 : index
    %c0_0 = arith.constant 0 : index
    %0 = vector.load %arg0[%c0, %c0_0] : memref<8x6xf32, #tpu.memory_space<vmem>>, vector<8x6xf32>
    %c0_1 = arith.constant 0 : index
    %c0_2 = arith.constant 0 : index
    %1 = vector.load %arg4[%c0_1, %c0_2] : memref<16x512xf32, #tpu.memory_space<vmem>>, vector<6x512xf32>
    %cst = arith.constant dense<0.000000e+00> : vector<8x512xf32>
    %2 = tpu.matmul %0, %1, %cst {dimension_numbers = #tpu.dot_dimension_numbers<[1], [0], [0], [1], [0, 0, 1, 1], [], []>} : vector<8x6xf32>, vector<6x512xf32>, vector<8x512xf32> -> vector<8x512xf32>
    %c0_3 = arith.constant 0 : index
    %c0_4 = arith.constant 0 : index
    %3 = vector.load %arg1[%c0_3, %c0_4] : memref<8x2xf32, #tpu.memory_space<vmem>>, vector<8x2xf32>
    %c6 = arith.constant 6 : index
    %c0_5 = arith.constant 0 : index
    %4 = vector.load %arg4[%c6, %c0_5] : memref<16x512xf32, #tpu.memory_space<vmem>>, vector<2x512xf32>
    %cst_6 = arith.constant dense<0.000000e+00> : vector<8x512xf32>
    %5 = tpu.matmul %3, %4, %cst_6 {dimension_numbers = #tpu.dot_dimension_numbers<[1], [0], [0], [1], [0, 0, 1, 1], [], []>} : vector<8x2xf32>, vector<2x512xf32>, vector<8x512xf32> -> vector<8x512xf32>
    %6 = arith.addf %2, %5 : vector<8x512xf32>
    %c0_7 = arith.constant 0 : index
    %c0_8 = arith.constant 0 : index
    %7 = vector.load %arg2[%c0_7, %c0_8] : memref<8x6xf32, #tpu.memory_space<vmem>>, vector<8x6xf32>
    %c8 = arith.constant 8 : index
    %c0_9 = arith.constant 0 : index
    %8 = vector.load %arg4[%c8, %c0_9] : memref<16x512xf32, #tpu.memory_space<vmem>>, vector<6x512xf32>
    %cst_10 = arith.constant dense<0.000000e+00> : vector<8x512xf32>
    %9 = tpu.matmul %7, %8, %cst_10 {dimension_numbers = #tpu.dot_dimension_numbers<[1], [0], [0], [1], [0, 0, 1, 1], [], []>} : vector<8x6xf32>, vector<6x512xf32>, vector<8x512xf32> -> vector<8x512xf32>
    %10 = arith.addf %6, %9 : vector<8x512xf32>
    %c0_11 = arith.constant 0 : index
    %c0_12 = arith.constant 0 : index
    %11 = vector.load %arg3[%c0_11, %c0_12] : memref<8x2xf32, #tpu.memory_space<vmem>>, vector<8x2xf32>
    %c14 = arith.constant 14 : index
    %c0_13 = arith.constant 0 : index
    %12 = vector.load %arg4[%c14, %c0_13] : memref<16x512xf32, #tpu.memory_space<vmem>>, vector<2x512xf32>
    %cst_14 = arith.constant dense<0.000000e+00> : vector<8x512xf32>
    %13 = tpu.matmul %11, %12, %cst_14 {dimension_numbers = #tpu.dot_dimension_numbers<[1], [0], [0], [1], [0, 0, 1, 1], [], []>} : vector<8x2xf32>, vector<2x512xf32>, vector<8x512xf32> -> vector<8x512xf32>
    %14 = arith.addf %10, %13 : vector<8x512xf32>
    %c0_15 = arith.constant 0 : index
    %c0_16 = arith.constant 0 : index
    %15 = vector.load %arg5[%c0_15, %c0_16] : memref<1x512xf32, #tpu.memory_space<vmem>>, vector<1x512xf32>
    %16 = vector.broadcast %15 : vector<1x512xf32> to vector<8x512xf32>
    %17 = arith.addf %14, %16 : vector<8x512xf32>
    %cst_17 = arith.constant 0.000000e+00 : f32
    %18 = vector.broadcast %cst_17 : f32 to vector<8x512xf32>
    %19 = arith.cmpf ogt, %17, %18 : vector<8x512xf32>
    %cst_18 = arith.constant 0.00999999977 : f32
    %20 = vector.broadcast %cst_18 : f32 to vector<8x512xf32>
    %21 = arith.mulf %20, %17 : vector<8x512xf32>
    %22 = arith.select %19, %17, %21 : vector<8x512xi1>, vector<8x512xf32>
    %23 = vector.extract_strided_slice %22 {offsets = [0, 0], sizes = [8, 256], strides = [1, 1]} : vector<8x512xf32> to vector<8x256xf32>
    %c0_19 = arith.constant 0 : index
    %c0_20 = arith.constant 0 : index
    %24 = vector.load %arg6[%c0_19, %c0_20] : memref<256x256xf32, #tpu.memory_space<vmem>>, vector<256x256xf32>
    %cst_21 = arith.constant dense<0.000000e+00> : vector<8x256xf32>
    %25 = tpu.matmul %23, %24, %cst_21 {dimension_numbers = #tpu.dot_dimension_numbers<[1], [0], [0], [1], [0, 0, 1, 1], [], []>} : vector<8x256xf32>, vector<256x256xf32>, vector<8x256xf32> -> vector<8x256xf32>
    %c0_22 = arith.constant 0 : index
    %c0_23 = arith.constant 0 : index
    %26 = vector.load %arg7[%c0_22, %c0_23] : memref<1x256xf32, #tpu.memory_space<vmem>>, vector<1x256xf32>
    %27 = vector.broadcast %26 : vector<1x256xf32> to vector<8x256xf32>
    %28 = arith.addf %25, %27 : vector<8x256xf32>
    %cst_24 = arith.constant 0.000000e+00 : f32
    %29 = vector.broadcast %cst_24 : f32 to vector<8x256xf32>
    %30 = arith.cmpf ogt, %28, %29 : vector<8x256xf32>
    %cst_25 = arith.constant 0.00999999977 : f32
    %31 = vector.broadcast %cst_25 : f32 to vector<8x256xf32>
    %32 = arith.mulf %31, %28 : vector<8x256xf32>
    %33 = arith.select %30, %28, %32 : vector<8x256xi1>, vector<8x256xf32>
    %34 = vector.extract_strided_slice %22 {offsets = [0, 256], sizes = [8, 256], strides = [1, 1]} : vector<8x512xf32> to vector<8x256xf32>
    %c0_26 = arith.constant 0 : index
    %c0_27 = arith.constant 0 : index
    %35 = vector.load %arg8[%c0_26, %c0_27] : memref<256x256xf32, #tpu.memory_space<vmem>>, vector<256x256xf32>
    %cst_28 = arith.constant dense<0.000000e+00> : vector<8x256xf32>
    %36 = tpu.matmul %34, %35, %cst_28 {dimension_numbers = #tpu.dot_dimension_numbers<[1], [0], [0], [1], [0, 0, 1, 1], [], []>} : vector<8x256xf32>, vector<256x256xf32>, vector<8x256xf32> -> vector<8x256xf32>
    %c0_29 = arith.constant 0 : index
    %c0_30 = arith.constant 0 : index
    %37 = vector.load %arg9[%c0_29, %c0_30] : memref<1x256xf32, #tpu.memory_space<vmem>>, vector<1x256xf32>
    %38 = vector.broadcast %37 : vector<1x256xf32> to vector<8x256xf32>
    %39 = arith.addf %36, %38 : vector<8x256xf32>
    %cst_31 = arith.constant 0.000000e+00 : f32
    %40 = vector.broadcast %cst_31 : f32 to vector<8x256xf32>
    %41 = arith.cmpf ogt, %39, %40 : vector<8x256xf32>
    %cst_32 = arith.constant 0.00999999977 : f32
    %42 = vector.broadcast %cst_32 : f32 to vector<8x256xf32>
    %43 = arith.mulf %42, %39 : vector<8x256xf32>
    %44 = arith.select %41, %39, %43 : vector<8x256xi1>, vector<8x256xf32>
    %c0_33 = arith.constant 0 : index
    %c0_34 = arith.constant 0 : index
    %45 = vector.load %arg10[%c0_33, %c0_34] : memref<512x2xf32, #tpu.memory_space<vmem>>, vector<256x2xf32>
    %cst_35 = arith.constant dense<0.000000e+00> : vector<8x2xf32>
    %46 = tpu.matmul %33, %45, %cst_35 {dimension_numbers = #tpu.dot_dimension_numbers<[1], [0], [0], [1], [0, 0, 1, 1], [], []>} : vector<8x256xf32>, vector<256x2xf32>, vector<8x2xf32> -> vector<8x2xf32>
    %c256 = arith.constant 256 : index
    %c0_36 = arith.constant 0 : index
    %47 = vector.load %arg10[%c256, %c0_36] : memref<512x2xf32, #tpu.memory_space<vmem>>, vector<256x2xf32>
    %cst_37 = arith.constant dense<0.000000e+00> : vector<8x2xf32>
    %48 = tpu.matmul %44, %47, %cst_37 {dimension_numbers = #tpu.dot_dimension_numbers<[1], [0], [0], [1], [0, 0, 1, 1], [], []>} : vector<8x256xf32>, vector<256x2xf32>, vector<8x2xf32> -> vector<8x2xf32>
    %49 = arith.addf %46, %48 : vector<8x2xf32>
    %c0_38 = arith.constant 0 : index
    %c0_39 = arith.constant 0 : index
    %50 = vector.load %arg11[%c0_38, %c0_39] : memref<1x2xf32, #tpu.memory_space<vmem>>, vector<1x2xf32>
    %51 = vector.broadcast %50 : vector<1x2xf32> to vector<8x2xf32>
    %52 = arith.addf %49, %51 : vector<8x2xf32>
    %c0_40 = arith.constant 0 : index
    %c0_41 = arith.constant 0 : index
    %53 = vector.load %arg12[%c0_40, %c0_41] : memref<8x2xf32, #tpu.memory_space<vmem>>, vector<8x2xf32>
    tpu.vector_store %arg12[%c0_40, %c0_41], %52 {strides = array<i32>} : memref<8x2xf32, #tpu.memory_space<vmem>>, vector<8x2xf32>,
    return
  }
}

</mosaic_0001>

<llo_original>
// kernel: tpu_custom_call.1
$region0: #{tpu_custom_call.1}
  #allocation0 [shape = 'u32[]', space=smem, size = 0x4, offset = 0x4, fixed_abs, tag = 'smem constant byte address 0x4 - core index']
  #allocation1 [shape = 'u32[72,128]{1,0:T(1,128)}', space=vmem, size = 0x9000, scoped, tag = 'internal scratch']
  %s0 = inlined_call_operand.vmem [shape: f32[8,6], index: 0, kind: input, shape index: {}]
  %s1 = inlined_call_operand.vmem [shape: f32[8,2], index: 1, kind: input, shape index: {}]
  %s2 = inlined_call_operand.vmem [shape: f32[8,6], index: 2, kind: input, shape index: {}]
  %s3 = inlined_call_operand.vmem [shape: f32[8,2], index: 3, kind: input, shape index: {}]
  %s4 = inlined_call_operand.hbm [shape: f32[16,512], index: 4, kind: input, shape index: {}]
  %s5 = inlined_call_operand.hbm [shape: f32[1,512], index: 5, kind: input, shape index: {}]
  %s6 = inlined_call_operand.vmem [shape: f32[256,256], index: 6, kind: input, shape index: {}]
  %s7 = inlined_call_operand.vmem [shape: f32[1,256], index: 7, kind: input, shape index: {}]
  %s8 = inlined_call_operand.hbm [shape: f32[256,256], index: 8, kind: input, shape index: {}]
  %s9 = inlined_call_operand.vmem [shape: f32[1,256], index: 9, kind: input, shape index: {}]
  %s10 = inlined_call_operand.vmem [shape: f32[512,2], index: 10, kind: input, shape index: {}]
  %s11 = inlined_call_operand.vmem [shape: f32[1,2], index: 11, kind: input, shape index: {}]
  %s12 = inlined_call_operand.vmem [shape: f32[8,2], index: 12, kind: output, shape index: {}]
  %s13 = sld [smem:[#allocation0]]
  $region70: #{tpu_custom_call.1} parent=0
    _
  %s15 = ssub.s32 1, %s13
  %s16 = scalar_select 0, %s15, %s13
  $region1: #{tpu_custom_call.1} parent=0
    #allocation2 [shape = 'u8[32768]{0}', space=vmem, size = 0x8000, scoped, tag = 'input window, operand 4, single buffered']
    #allocation3 [shape = 's32[1]{0}', space=sflag, size = 0x4, scoped, tag = 'scoped memory for tpu_custom_call.1']
    #allocation4 [shape = 'u8[2048]{0}', space=vmem, size = 0x800, scoped, tag = 'input window, operand 5, single buffered']
    #allocation5 [shape = 's32[1]{0}', space=sflag, size = 0x4, scoped, tag = 'scoped memory for tpu_custom_call.1']
    #allocation6 [shape = 'u8[262144]{0}', space=vmem, size = 0x40000, scoped, tag = 'input window, operand 8, single buffered']
    %17 = vsyncpa [#allocation3], 0
    %18 = vsyncpa [#allocation5], 0
    // Predicated region
    $region2: #{tpu_custom_call.1} parent=1 // pred_check
      _
    $region3: #{tpu_custom_call.1} parent=1 // pred_check_branch
      %20 = sbr.rel (0) target = $region5
    $region4: #{tpu_custom_call.1} parent=1 // pred_region
      _
    $region5: #{tpu_custom_call.1} parent=1 // pred_fallthru
      _
    // Predicated region
    $region6: #{tpu_custom_call.1} parent=1 // pred_check
      _
    $region7: #{tpu_custom_call.1} parent=1 // pred_check_branch
      %22 = sbr.rel (0) target = $region9
    $region8: #{tpu_custom_call.1} parent=1 // pred_region
      _
    $region9: #{tpu_custom_call.1} parent=1 // pred_fallthru
      _
    // Predicated region
    $region10: #{tpu_custom_call.1} parent=1 // pred_check
      _
    $region11: #{tpu_custom_call.1} parent=1 // pred_check_branch
      %24 = sbr.rel (0) target = $region13
    $region12: #{tpu_custom_call.1} parent=1 // pred_region
      _
    $region13: #{tpu_custom_call.1} parent=1 // pred_fallthru
      _
    // Predicated region
    $region14: #{tpu_custom_call.1} parent=1 // pred_check
      _
    $region15: #{tpu_custom_call.1} parent=1 // pred_check_branch
      %26 = sbr.rel (0) target = $region17
    $region16: #{tpu_custom_call.1} parent=1 // pred_region
      _
    $region17: #{tpu_custom_call.1} parent=1 // pred_fallthru
      _
    // Predicated region
    $region18: #{tpu_custom_call.1} parent=1 // pred_check
      _
    $region19: #{tpu_custom_call.1} parent=1 // pred_check_branch
      %28 = sbr.rel (0) target = $region21
    $region20: #{tpu_custom_call.1} parent=1 // pred_region
      %30 = vsyncadd [#allocation3], 0
      %s31 = sshll.u32 %s4, 4
      %s32 = int_to_ptr.hbm [resolvable:$true] %s31
      %s33 = sshll.u32 [#allocation2], 4
      %s34 = int_to_ptr.vmem [resolvable:$true] %s33
      %39 = dma.hbm_to_vmem [thread:$0]  %s32, 1024, %s34, [#allocation3], 512, 512, 32
    $region21: #{tpu_custom_call.1} parent=1 // pred_fallthru
      _
    // Predicated region
    $region22: #{tpu_custom_call.1} parent=1 // pred_check
      _
    $region23: #{tpu_custom_call.1} parent=1 // pred_check_branch
      %41 = sbr.rel (0) target = $region25
    $region24: #{tpu_custom_call.1} parent=1 // pred_region
      %43 = vsyncadd [#allocation5], 0
      %s45 = sshll.u32 %s5, 4
      %s46 = int_to_ptr.hbm [resolvable:$true] %s45
      %s47 = sshll.u32 [#allocation4], 4
      %s48 = int_to_ptr.vmem [resolvable:$true] %s47
      %50 = dma.hbm_to_vmem [thread:$0]  %s46, 64, %s48, [#allocation5]
    $region25: #{tpu_custom_call.1} parent=1 // pred_fallthru
      _
    // Predicated region
    $region26: #{tpu_custom_call.1} parent=1 // pred_check
      _
    $region27: #{tpu_custom_call.1} parent=1 // pred_check_branch
      %52 = sbr.rel (0) target = $region29
    $region28: #{tpu_custom_call.1} parent=1 // pred_region
      _
    $region29: #{tpu_custom_call.1} parent=1 // pred_fallthru
      _
    // Predicated region
    $region30: #{tpu_custom_call.1} parent=1 // pred_check
      _
    $region31: #{tpu_custom_call.1} parent=1 // pred_check_branch
      %54 = sbr.rel (0) target = $region33
    $region32: #{tpu_custom_call.1} parent=1 // pred_region
      _
    $region33: #{tpu_custom_call.1} parent=1 // pred_fallthru
      _
    // Predicated region
    $region34: #{tpu_custom_call.1} parent=1 // pred_check
      _
    $region35: #{tpu_custom_call.1} parent=1 // pred_check_branch
      %56 = sbr.rel (0) target = $region37
    $region36: #{tpu_custom_call.1} parent=1 // pred_region
      %58 = vsyncadd [#allocation5], 0
      %s59 = sshll.u32 %s8, 4
      %s60 = int_to_ptr.hbm [resolvable:$true] %s59
      %s61 = sshll.u32 [#allocation6], 4
      %s62 = int_to_ptr.vmem [resolvable:$true] %s61
      %67 = dma.hbm_to_vmem [thread:$0]  %s60, 8192, %s62, [#allocation5], 256, 256, 16
    $region37: #{tpu_custom_call.1} parent=1 // pred_fallthru
      _
    // Predicated region
    $region38: #{tpu_custom_call.1} parent=1 // pred_check
      _
    $region39: #{tpu_custom_call.1} parent=1 // pred_check_branch
      %69 = sbr.rel (0) target = $region41
    $region40: #{tpu_custom_call.1} parent=1 // pred_region
      _
    $region41: #{tpu_custom_call.1} parent=1 // pred_fallthru
      _
    // Predicated region
    $region42: #{tpu_custom_call.1} parent=1 // pred_check
      _
    $region43: #{tpu_custom_call.1} parent=1 // pred_check_branch
      %71 = sbr.rel (0) target = $region45
    $region44: #{tpu_custom_call.1} parent=1 // pred_region
      _
    $region45: #{tpu_custom_call.1} parent=1 // pred_fallthru
      _
    // Predicated region
    $region46: #{tpu_custom_call.1} parent=1 // pred_check
      _
    $region47: #{tpu_custom_call.1} parent=1 // pred_check_branch
      %73 = sbr.rel (0) target = $region49
    $region48: #{tpu_custom_call.1} parent=1 // pred_region
      _
    $region49: #{tpu_custom_call.1} parent=1 // pred_fallthru
      _
    // Predicated region
    $region50: #{tpu_custom_call.1} parent=1 // pred_check
      _
    $region51: #{tpu_custom_call.1} parent=1 // pred_check_branch
      %75 = sbr.rel (0) target = $region53
    $region52: #{tpu_custom_call.1} parent=1 // pred_region
      %77 = dma.done [#allocation3], 1024
    $region53: #{tpu_custom_call.1} parent=1 // pred_fallthru
      _
    // Predicated region
    $region54: #{tpu_custom_call.1} parent=1 // pred_check
      _
    $region55: #{tpu_custom_call.1} parent=1 // pred_check_branch
      %79 = sbr.rel (0) target = $region57
    $region56: #{tpu_custom_call.1} parent=1 // pred_region
      %81 = dma.done [#allocation5], 64
    $region57: #{tpu_custom_call.1} parent=1 // pred_fallthru
      _
    // Predicated region
    $region58: #{tpu_custom_call.1} parent=1 // pred_check
      _
    $region59: #{tpu_custom_call.1} parent=1 // pred_check_branch
      %83 = sbr.rel (0) target = $region61
    $region60: #{tpu_custom_call.1} parent=1 // pred_region
      %85 = dma.done [#allocation5], 8192
    $region61: #{tpu_custom_call.1} parent=1 // pred_fallthru
      _
    %v86 = vld [vmem:[%s0] sm:$0xff]
    %v87 = vld [vmem:[#allocation2] sm:$0x3f]
    %v88 = vld [vmem:[#allocation2 + $0x8] sm:$0x3f]
    %v89 = vld [vmem:[#allocation2 + $0x10] sm:$0x3f]
    %v90 = vld [vmem:[#allocation2 + $0x18] sm:$0x3f]
    %v91 = vld [vmem:[%s1] sm:$0xff]
    %v92 = vld [vmem:[#allocation2] sm:$0xc0]
    %v93 = vld [vmem:[#allocation2 + $0x8] sm:$0xc0]
    %v94 = vld [vmem:[#allocation2 + $0x10] sm:$0xc0]
    %v95 = vld [vmem:[#allocation2 + $0x18] sm:$0xc0]
    %v100 = vrot.slane %v92, 6
    %v101 = vrot.slane %v93, 6
    %v102 = vrot.slane %v94, 6
    %v103 = vrot.slane %v95, 6
    %vm104 = vcmask 15360
    %v106 = vsel %vm104, %v91, 0
    %vm108 = vcmask 1041408
    %v109 = vsel %vm108, %v100, 0
    %v111 = vsel %vm108, %v101, 0
    %v113 = vsel %vm108, %v102, 0
    %v115 = vsel %vm108, %v103, 0
    %117 = vmatpush.msra.mxu0 0.0
    %118 = vmatpush.msra.mxu0 0.0
    %119 = vmatpush.msra.mxu0 0.0
    %120 = vmatpush.msra.mxu0 0.0
    %121 = vmatpush.msra.mxu0 0.0
    %122 = vmatpush.msra.mxu0 0.0
    %123 = vmatpush.msra.mxu0 0.0
    %124 = vmatpush.msra.mxu0 0.0
    %125 = vmatpush.msra.mxu0 0.0
    %126 = vmatpush.msra.mxu0 0.0
    %127 = vmatpush.msra.mxu0 0.0
    %128 = vmatpush.msra.mxu0 0.0
    %129 = vmatpush.msra.mxu0 0.0
    %130 = vmatpush.msra.mxu0 0.0
    %131 = vmatpush.msra.mxu0 0.0
    %132 = vmatpush.msra.mxu0 %v109
    %133 = vmatmul.f32.gmra.mxu0 %v106
    %v134 = vpop.f32.mrf.mxu0
    %v135 = vadd.f32 0.0, %v134
    %136 = vdwg.mxu0
    %137 = vmatpush.msra.mxu0 0.0
    %138 = vmatpush.msra.mxu0 0.0
    %139 = vmatpush.msra.mxu0 0.0
    %140 = vmatpush.msra.mxu0 0.0
    %141 = vmatpush.msra.mxu0 0.0
    %142 = vmatpush.msra.mxu0 0.0
    %143 = vmatpush.msra.mxu0 0.0
    %144 = vmatpush.msra.mxu0 0.0
    %145 = vmatpush.msra.mxu0 0.0
    %146 = vmatpush.msra.mxu0 0.0
    %147 = vmatpush.msra.mxu0 0.0
    %148 = vmatpush.msra.mxu0 0.0
    %149 = vmatpush.msra.mxu0 0.0
    %150 = vmatpush.msra.mxu0 0.0
    %151 = vmatpush.msra.mxu0 0.0
    %152 = vmatpush.msra.mxu0 %v111
    %153 = vmatmul.f32.gmra.mxu0 %v106
    %v154 = vpop.f32.mrf.mxu0
    %v155 = vadd.f32 0.0, %v154
    %156 = vdwg.mxu0
    %157 = vmatpush.msra.mxu0 0.0
    %158 = vmatpush.msra.mxu0 0.0
    %159 = vmatpush.msra.mxu0 0.0
    %160 = vmatpush.msra.mxu0 0.0
    %161 = vmatpush.msra.mxu0 0.0
    %162 = vmatpush.msra.mxu0 0.0
    %163 = vmatpush.msra.mxu0 0.0
    %164 = vmatpush.msra.mxu0 0.0
    %165 = vmatpush.msra.mxu0 0.0
    %166 = vmatpush.msra.mxu0 0.0
    %167 = vmatpush.msra.mxu0 0.0
    %168 = vmatpush.msra.mxu0 0.0
    %169 = vmatpush.msra.mxu0 0.0
    %170 = vmatpush.msra.mxu0 0.0
    %171 = vmatpush.msra.mxu0 0.0
    %172 = vmatpush.msra.mxu0 %v113
    %173 = vmatmul.f32.gmra.mxu0 %v106
    %v174 = vpop.f32.mrf.mxu0
    %v175 = vadd.f32 0.0, %v174
    %176 = vdwg.mxu0
    %177 = vmatpush.msra.mxu0 0.0
    %178 = vmatpush.msra.mxu0 0.0
    %179 = vmatpush.msra.mxu0 0.0
    %180 = vmatpush.msra.mxu0 0.0
    %181 = vmatpush.msra.mxu0 0.0
    %182 = vmatpush.msra.mxu0 0.0
    %183 = vmatpush.msra.mxu0 0.0
    %184 = vmatpush.msra.mxu0 0.0
    %185 = vmatpush.msra.mxu0 0.0
    %186 = vmatpush.msra.mxu0 0.0
    %187 = vmatpush.msra.mxu0 0.0
    %188 = vmatpush.msra.mxu0 0.0
    %189 = vmatpush.msra.mxu0 0.0
    %190 = vmatpush.msra.mxu0 0.0
    %191 = vmatpush.msra.mxu0 0.0
    %192 = vmatpush.msra.mxu0 %v115
    %193 = vmatmul.f32.gmra.mxu0 %v106
    %v194 = vpop.f32.mrf.mxu0
    %v195 = vadd.f32 0.0, %v194
    %196 = vdwg.mxu0
    %vm197 = vcmask 48128
    %v199 = vsel %vm197, %v86, 0
    %vm201 = vcmask 1045504
    %v203 = vsel %vm201, %v87, 0
    %v206 = vsel %vm201, %v88, 0
    %v209 = vsel %vm201, %v89, 0
    %v212 = vsel %vm201, %v90, 0
    %214 = vmatpush.msra.mxu0 0.0
    %215 = vmatpush.msra.mxu0 0.0
    %216 = vmatpush.msra.mxu0 0.0
    %217 = vmatpush.msra.mxu0 0.0
    %218 = vmatpush.msra.mxu0 0.0
    %219 = vmatpush.msra.mxu0 0.0
    %220 = vmatpush.msra.mxu0 0.0
    %221 = vmatpush.msra.mxu0 0.0
    %222 = vmatpush.msra.mxu0 0.0
    %223 = vmatpush.msra.mxu0 0.0
    %224 = vmatpush.msra.mxu0 0.0
    %225 = vmatpush.msra.mxu0 0.0
    %226 = vmatpush.msra.mxu0 0.0
    %227 = vmatpush.msra.mxu0 0.0
    %228 = vmatpush.msra.mxu0 0.0
    %229 = vmatpush.msra.mxu0 %v203
    %230 = vmatmul.f32.gmra.mxu0 %v199
    %v231 = vpop.f32.mrf.mxu0
    %v232 = vadd.f32 %v135, %v231
    %233 = vdwg.mxu0
    %234 = vmatpush.msra.mxu0 0.0
    %235 = vmatpush.msra.mxu0 0.0
    %236 = vmatpush.msra.mxu0 0.0
    %237 = vmatpush.msra.mxu0 0.0
    %238 = vmatpush.msra.mxu0 0.0
    %239 = vmatpush.msra.mxu0 0.0
    %240 = vmatpush.msra.mxu0 0.0
    %241 = vmatpush.msra.mxu0 0.0
    %242 = vmatpush.msra.mxu0 0.0
    %243 = vmatpush.msra.mxu0 0.0
    %244 = vmatpush.msra.mxu0 0.0
    %245 = vmatpush.msra.mxu0 0.0
    %246 = vmatpush.msra.mxu0 0.0
    %247 = vmatpush.msra.mxu0 0.0
    %248 = vmatpush.msra.mxu0 0.0
    %249 = vmatpush.msra.mxu0 %v206
    %250 = vmatmul.f32.gmra.mxu0 %v199
    %v251 = vpop.f32.mrf.mxu0
    %v252 = vadd.f32 %v155, %v251
    %253 = vdwg.mxu0
    %254 = vmatpush.msra.mxu0 0.0
    %255 = vmatpush.msra.mxu0 0.0
    %256 = vmatpush.msra.mxu0 0.0
    %257 = vmatpush.msra.mxu0 0.0
    %258 = vmatpush.msra.mxu0 0.0
    %259 = vmatpush.msra.mxu0 0.0
    %260 = vmatpush.msra.mxu0 0.0
    %261 = vmatpush.msra.mxu0 0.0
    %262 = vmatpush.msra.mxu0 0.0
    %263 = vmatpush.msra.mxu0 0.0
    %264 = vmatpush.msra.mxu0 0.0
    %265 = vmatpush.msra.mxu0 0.0
    %266 = vmatpush.msra.mxu0 0.0
    %267 = vmatpush.msra.mxu0 0.0
    %268 = vmatpush.msra.mxu0 0.0
    %269 = vmatpush.msra.mxu0 %v209
    %270 = vmatmul.f32.gmra.mxu0 %v199
    %v271 = vpop.f32.mrf.mxu0
    %v272 = vadd.f32 %v175, %v271
    %273 = vdwg.mxu0
    %274 = vmatpush.msra.mxu0 0.0
    %275 = vmatpush.msra.mxu0 0.0
    %276 = vmatpush.msra.mxu0 0.0
    %277 = vmatpush.msra.mxu0 0.0
    %278 = vmatpush.msra.mxu0 0.0
    %279 = vmatpush.msra.mxu0 0.0
    %280 = vmatpush.msra.mxu0 0.0
    %281 = vmatpush.msra.mxu0 0.0
    %282 = vmatpush.msra.mxu0 0.0
    %283 = vmatpush.msra.mxu0 0.0
    %284 = vmatpush.msra.mxu0 0.0
    %285 = vmatpush.msra.mxu0 0.0
    %286 = vmatpush.msra.mxu0 0.0
    %287 = vmatpush.msra.mxu0 0.0
    %288 = vmatpush.msra.mxu0 0.0
    %289 = vmatpush.msra.mxu0 %v212
    %290 = vmatmul.f32.gmra.mxu0 %v199
    %v291 = vpop.f32.mrf.mxu0
    %v292 = vadd.f32 %v195, %v291
    %293 = vdwg.mxu0
    %v294 = vld [vmem:[%s2] sm:$0xff]
    %v295 = vld [vmem:[#allocation2 + $0x20] sm:$0x3f]
    %v296 = vld [vmem:[#allocation2 + $0x28] sm:$0x3f]
    %v297 = vld [vmem:[#allocation2 + $0x30] sm:$0x3f]
    %v298 = vld [vmem:[#allocation2 + $0x38] sm:$0x3f]
    %v300 = vsel %vm197, %v294, 0
    %v303 = vsel %vm201, %v295, 0
    %v306 = vsel %vm201, %v296, 0
    %v309 = vsel %vm201, %v297, 0
    %v312 = vsel %vm201, %v298, 0
    %314 = vmatpush.msra.mxu0 0.0
    %315 = vmatpush.msra.mxu0 0.0
    %316 = vmatpush.msra.mxu0 0.0
    %317 = vmatpush.msra.mxu0 0.0
    %318 = vmatpush.msra.mxu0 0.0
    %319 = vmatpush.msra.mxu0 0.0
    %320 = vmatpush.msra.mxu0 0.0
    %321 = vmatpush.msra.mxu0 0.0
    %322 = vmatpush.msra.mxu0 0.0
    %323 = vmatpush.msra.mxu0 0.0
    %324 = vmatpush.msra.mxu0 0.0
    %325 = vmatpush.msra.mxu0 0.0
    %326 = vmatpush.msra.mxu0 0.0
    %327 = vmatpush.msra.mxu0 0.0
    %328 = vmatpush.msra.mxu0 0.0
    %329 = vmatpush.msra.mxu0 %v303
    %330 = vmatmul.f32.gmra.mxu0 %v300
    %v331 = vpop.f32.mrf.mxu0
    %v332 = vadd.f32 0.0, %v331
    %333 = vdwg.mxu0
    %334 = vmatpush.msra.mxu0 0.0
    %335 = vmatpush.msra.mxu0 0.0
    %336 = vmatpush.msra.mxu0 0.0
    %337 = vmatpush.msra.mxu0 0.0
    %338 = vmatpush.msra.mxu0 0.0
    %339 = vmatpush.msra.mxu0 0.0
    %340 = vmatpush.msra.mxu0 0.0
    %341 = vmatpush.msra.mxu0 0.0
    %342 = vmatpush.msra.mxu0 0.0
    %343 = vmatpush.msra.mxu0 0.0
    %344 = vmatpush.msra.mxu0 0.0
    %345 = vmatpush.msra.mxu0 0.0
    %346 = vmatpush.msra.mxu0 0.0
    %347 = vmatpush.msra.mxu0 0.0
    %348 = vmatpush.msra.mxu0 0.0
    %349 = vmatpush.msra.mxu0 %v306
    %350 = vmatmul.f32.gmra.mxu0 %v300
    %v351 = vpop.f32.mrf.mxu0
    %v352 = vadd.f32 0.0, %v351
    %353 = vdwg.mxu0
    %354 = vmatpush.msra.mxu0 0.0
    %355 = vmatpush.msra.mxu0 0.0
    %356 = vmatpush.msra.mxu0 0.0
    %357 = vmatpush.msra.mxu0 0.0
    %358 = vmatpush.msra.mxu0 0.0
    %359 = vmatpush.msra.mxu0 0.0
    %360 = vmatpush.msra.mxu0 0.0
    %361 = vmatpush.msra.mxu0 0.0
    %362 = vmatpush.msra.mxu0 0.0
    %363 = vmatpush.msra.mxu0 0.0
    %364 = vmatpush.msra.mxu0 0.0
    %365 = vmatpush.msra.mxu0 0.0
    %366 = vmatpush.msra.mxu0 0.0
    %367 = vmatpush.msra.mxu0 0.0
    %368 = vmatpush.msra.mxu0 0.0
    %369 = vmatpush.msra.mxu0 %v309
    %370 = vmatmul.f32.gmra.mxu0 %v300
    %v371 = vpop.f32.mrf.mxu0
    %v372 = vadd.f32 0.0, %v371
    %373 = vdwg.mxu0
    %374 = vmatpush.msra.mxu0 0.0
    %375 = vmatpush.msra.mxu0 0.0
    %376 = vmatpush.msra.mxu0 0.0
    %377 = vmatpush.msra.mxu0 0.0
    %378 = vmatpush.msra.mxu0 0.0
    %379 = vmatpush.msra.mxu0 0.0
    %380 = vmatpush.msra.mxu0 0.0
    %381 = vmatpush.msra.mxu0 0.0
    %382 = vmatpush.msra.mxu0 0.0
    %383 = vmatpush.msra.mxu0 0.0
    %384 = vmatpush.msra.mxu0 0.0
    %385 = vmatpush.msra.mxu0 0.0
    %386 = vmatpush.msra.mxu0 0.0
    %387 = vmatpush.msra.mxu0 0.0
    %388 = vmatpush.msra.mxu0 0.0
    %389 = vmatpush.msra.mxu0 %v312
    %390 = vmatmul.f32.gmra.mxu0 %v300
    %v391 = vpop.f32.mrf.mxu0
    %v392 = vadd.f32 0.0, %v391
    %393 = vdwg.mxu0
    %v394 = vadd.f32 %v232, %v332
    %v395 = vadd.f32 %v252, %v352
    %v396 = vadd.f32 %v272, %v372
    %v397 = vadd.f32 %v292, %v392
    %v398 = vld [vmem:[%s3] sm:$0xff]
    %v399 = vld [vmem:[#allocation2 + $0x20] sm:$0xc0]
    %v400 = vld [vmem:[#allocation2 + $0x28] sm:$0xc0]
    %v401 = vld [vmem:[#allocation2 + $0x30] sm:$0xc0]
    %v402 = vld [vmem:[#allocation2 + $0x38] sm:$0xc0]
    %v407 = vrot.slane %v399, 6
    %v408 = vrot.slane %v400, 6
    %v409 = vrot.slane %v401, 6
    %v410 = vrot.slane %v402, 6
    %v412 = vsel %vm104, %v398, 0
    %v414 = vsel %vm108, %v407, 0
    %v416 = vsel %vm108, %v408, 0
    %v418 = vsel %vm108, %v409, 0
    %v420 = vsel %vm108, %v410, 0
    %422 = vmatpush.msra.mxu0 0.0
    %423 = vmatpush.msra.mxu0 0.0
    %424 = vmatpush.msra.mxu0 0.0
    %425 = vmatpush.msra.mxu0 0.0
    %426 = vmatpush.msra.mxu0 0.0
    %427 = vmatpush.msra.mxu0 0.0
    %428 = vmatpush.msra.mxu0 0.0
    %429 = vmatpush.msra.mxu0 0.0
    %430 = vmatpush.msra.mxu0 0.0
    %431 = vmatpush.msra.mxu0 0.0
    %432 = vmatpush.msra.mxu0 0.0
    %433 = vmatpush.msra.mxu0 0.0
    %434 = vmatpush.msra.mxu0 0.0
    %435 = vmatpush.msra.mxu0 0.0
    %436 = vmatpush.msra.mxu0 0.0
    %437 = vmatpush.msra.mxu0 %v414
    %438 = vmatmul.f32.gmra.mxu0 %v412
    %v439 = vpop.f32.mrf.mxu0
    %v440 = vadd.f32 0.0, %v439
    %441 = vdwg.mxu0
    %442 = vmatpush.msra.mxu0 0.0
    %443 = vmatpush.msra.mxu0 0.0
    %444 = vmatpush.msra.mxu0 0.0
    %445 = vmatpush.msra.mxu0 0.0
    %446 = vmatpush.msra.mxu0 0.0
    %447 = vmatpush.msra.mxu0 0.0
    %448 = vmatpush.msra.mxu0 0.0
    %449 = vmatpush.msra.mxu0 0.0
    %450 = vmatpush.msra.mxu0 0.0
    %451 = vmatpush.msra.mxu0 0.0
    %452 = vmatpush.msra.mxu0 0.0
    %453 = vmatpush.msra.mxu0 0.0
    %454 = vmatpush.msra.mxu0 0.0
    %455 = vmatpush.msra.mxu0 0.0
    %456 = vmatpush.msra.mxu0 0.0
    %457 = vmatpush.msra.mxu0 %v416
    %458 = vmatmul.f32.gmra.mxu0 %v412
    %v459 = vpop.f32.mrf.mxu0
    %v460 = vadd.f32 0.0, %v459
    %461 = vdwg.mxu0
    %462 = vmatpush.msra.mxu0 0.0
    %463 = vmatpush.msra.mxu0 0.0
    %464 = vmatpush.msra.mxu0 0.0
    %465 = vmatpush.msra.mxu0 0.0
    %466 = vmatpush.msra.mxu0 0.0
    %467 = vmatpush.msra.mxu0 0.0
    %468 = vmatpush.msra.mxu0 0.0
    %469 = vmatpush.msra.mxu0 0.0
    %470 = vmatpush.msra.mxu0 0.0
    %471 = vmatpush.msra.mxu0 0.0
    %472 = vmatpush.msra.mxu0 0.0
    %473 = vmatpush.msra.mxu0 0.0
    %474 = vmatpush.msra.mxu0 0.0
    %475 = vmatpush.msra.mxu0 0.0
    %476 = vmatpush.msra.mxu0 0.0
    %477 = vmatpush.msra.mxu0 %v418
    %478 = vmatmul.f32.gmra.mxu0 %v412
    %v479 = vpop.f32.mrf.mxu0
    %v480 = vadd.f32 0.0, %v479
    %481 = vdwg.mxu0
    %482 = vmatpush.msra.mxu0 0.0
    %483 = vmatpush.msra.mxu0 0.0
    %484 = vmatpush.msra.mxu0 0.0
    %485 = vmatpush.msra.mxu0 0.0
    %486 = vmatpush.msra.mxu0 0.0
    %487 = vmatpush.msra.mxu0 0.0
    %488 = vmatpush.msra.mxu0 0.0
    %489 = vmatpush.msra.mxu0 0.0
    %490 = vmatpush.msra.mxu0 0.0
    %491 = vmatpush.msra.mxu0 0.0
    %492 = vmatpush.msra.mxu0 0.0
    %493 = vmatpush.msra.mxu0 0.0
    %494 = vmatpush.msra.mxu0 0.0
    %495 = vmatpush.msra.mxu0 0.0
    %496 = vmatpush.msra.mxu0 0.0
    %497 = vmatpush.msra.mxu0 %v420
    %498 = vmatmul.f32.gmra.mxu0 %v412
    %v499 = vpop.f32.mrf.mxu0
    %v500 = vadd.f32 0.0, %v499
    %501 = vdwg.mxu0
    %v502 = vadd.f32 %v394, %v440
    %v503 = vadd.f32 %v395, %v460
    %v504 = vadd.f32 %v396, %v480
    %v505 = vadd.f32 %v397, %v500
    %v506 = vld [vmem:[#allocation4] sm:$0xf]
    %v508 = vperm.slane %v506, 0
    %v509 = vperm.slane %v506, 1
    %v510 = vperm.slane %v506, 2
    %v511 = vperm.slane %v506, 3
    %v516 = vadd.f32 %v502, %v508
    %v517 = vadd.f32 %v503, %v509
    %v518 = vadd.f32 %v504, %v510
    %v519 = vadd.f32 %v505, %v511
    %vm520 = vcmp.gt.f32.partialorder %v516, 0.0
    %vm521 = vcmp.gt.f32.partialorder %v517, 0.0
    %vm522 = vcmp.gt.f32.partialorder %v518, 0.0
    %vm523 = vcmp.gt.f32.partialorder %v519, 0.0
    %v524 = vmul.f32 %v516, 0.01
    %v525 = vmul.f32 %v517, 0.01
    %v526 = vmul.f32 %v518, 0.01
    %v527 = vmul.f32 %v519, 0.01
    %v528 = vsel %vm520, %v516, %v524
    %v529 = vsel %vm521, %v517, %v525
    %v530 = vsel %vm522, %v518, %v526
    %v531 = vsel %vm523, %v519, %v527
    %v532 = vld [vmem:[%s6] sm:$0xff]
    %v533 = vld [vmem:[%s6 + $0x8] sm:$0xff]
    %v534 = vld [vmem:[%s6 + $0x10] sm:$0xff]
    %v535 = vld [vmem:[%s6 + $0x18] sm:$0xff]
    %v536 = vld [vmem:[%s6 + $0x20] sm:$0xff]
    %v537 = vld [vmem:[%s6 + $0x28] sm:$0xff]
    %v538 = vld [vmem:[%s6 + $0x30] sm:$0xff]
    %v539 = vld [vmem:[%s6 + $0x38] sm:$0xff]
    %v540 = vld [vmem:[%s6 + $0x40] sm:$0xff]
    %v541 = vld [vmem:[%s6 + $0x48] sm:$0xff]
    %v542 = vld [vmem:[%s6 + $0x50] sm:$0xff]
    %v543 = vld [vmem:[%s6 + $0x58] sm:$0xff]
    %v544 = vld [vmem:[%s6 + $0x60] sm:$0xff]
    %v545 = vld [vmem:[%s6 + $0x68] sm:$0xff]
    %v546 = vld [vmem:[%s6 + $0x70] sm:$0xff]
    %v547 = vld [vmem:[%s6 + $0x78] sm:$0xff]
    %v548 = vld [vmem:[%s6 + $0x80] sm:$0xff]
    %v549 = vld [vmem:[%s6 + $0x88] sm:$0xff]
    %v550 = vld [vmem:[%s6 + $0x90] sm:$0xff]
    %v551 = vld [vmem:[%s6 + $0x98] sm:$0xff]
    %v552 = vld [vmem:[%s6 + $0xa0] sm:$0xff]
    %v553 = vld [vmem:[%s6 + $0xa8] sm:$0xff]
    %v554 = vld [vmem:[%s6 + $0xb0] sm:$0xff]
    %v555 = vld [vmem:[%s6 + $0xb8] sm:$0xff]
    %v556 = vld [vmem:[%s6 + $0xc0] sm:$0xff]
    %v557 = vld [vmem:[%s6 + $0xc8] sm:$0xff]
    %v558 = vld [vmem:[%s6 + $0xd0] sm:$0xff]
    %v559 = vld [vmem:[%s6 + $0xd8] sm:$0xff]
    %v560 = vld [vmem:[%s6 + $0xe0] sm:$0xff]
    %v561 = vld [vmem:[%s6 + $0xe8] sm:$0xff]
    %v562 = vld [vmem:[%s6 + $0xf0] sm:$0xff]
    %v563 = vld [vmem:[%s6 + $0xf8] sm:$0xff]
    %v564 = vld [vmem:[%s6 + $0x100] sm:$0xff]
    %v565 = vld [vmem:[%s6 + $0x108] sm:$0xff]
    %v566 = vld [vmem:[%s6 + $0x110] sm:$0xff]
    %v567 = vld [vmem:[%s6 + $0x118] sm:$0xff]
    %v568 = vld [vmem:[%s6 + $0x120] sm:$0xff]
    %v569 = vld [vmem:[%s6 + $0x128] sm:$0xff]
    %v570 = vld [vmem:[%s6 + $0x130] sm:$0xff]
    %v571 = vld [vmem:[%s6 + $0x138] sm:$0xff]
    %v572 = vld [vmem:[%s6 + $0x140] sm:$0xff]
    %v573 = vld [vmem:[%s6 + $0x148] sm:$0xff]
    %v574 = vld [vmem:[%s6 + $0x150] sm:$0xff]
    %v575 = vld [vmem:[%s6 + $0x158] sm:$0xff]
    %v576 = vld [vmem:[%s6 + $0x160] sm:$0xff]
    %v577 = vld [vmem:[%s6 + $0x168] sm:$0xff]
    %v578 = vld [vmem:[%s6 + $0x170] sm:$0xff]
    %v579 = vld [vmem:[%s6 + $0x178] sm:$0xff]
    %v580 = vld [vmem:[%s6 + $0x180] sm:$0xff]
    %v581 = vld [vmem:[%s6 + $0x188] sm:$0xff]
    %v582 = vld [vmem:[%s6 + $0x190] sm:$0xff]
    %v583 = vld [vmem:[%s6 + $0x198] sm:$0xff]
    %v584 = vld [vmem:[%s6 + $0x1a0] sm:$0xff]
    %v585 = vld [vmem:[%s6 + $0x1a8] sm:$0xff]
    %v586 = vld [vmem:[%s6 + $0x1b0] sm:$0xff]
    %v587 = vld [vmem:[%s6 + $0x1b8] sm:$0xff]
    %v588 = vld [vmem:[%s6 + $0x1c0] sm:$0xff]
    %v589 = vld [vmem:[%s6 + $0x1c8] sm:$0xff]
    %v590 = vld [vmem:[%s6 + $0x1d0] sm:$0xff]
    %v591 = vld [vmem:[%s6 + $0x1d8] sm:$0xff]
    %v592 = vld [vmem:[%s6 + $0x1e0] sm:$0xff]
    %v593 = vld [vmem:[%s6 + $0x1e8] sm:$0xff]
    %v594 = vld [vmem:[%s6 + $0x1f0] sm:$0xff]
    %v595 = vld [vmem:[%s6 + $0x1f8] sm:$0xff]
    %v596 = vld [vmem:[%s7] sm:$0x3]
    %v598 = vperm.slane %v596, 0
    %v599 = vperm.slane %v596, 1
    %602 = vmatpush.msra.mxu0 %v562
    %603 = vmatpush.msra.mxu0 %v560
    %604 = vmatpush.msra.mxu0 %v558
    %605 = vmatpush.msra.mxu0 %v556
    %606 = vmatpush.msra.mxu0 %v554
    %607 = vmatpush.msra.mxu0 %v552
    %608 = vmatpush.msra.mxu0 %v550
    %609 = vmatpush.msra.mxu0 %v548
    %610 = vmatpush.msra.mxu0 %v546
    %611 = vmatpush.msra.mxu0 %v544
    %612 = vmatpush.msra.mxu0 %v542
    %613 = vmatpush.msra.mxu0 %v540
    %614 = vmatpush.msra.mxu0 %v538
    %615 = vmatpush.msra.mxu0 %v536
    %616 = vmatpush.msra.mxu0 %v534
    %617 = vmatpush.msra.mxu0 %v532
    %618 = vmatmul.f32.gmra.mxu0 %v528
    %v619 = vpop.f32.mrf.mxu0
    %v620 = vadd.f32 %v598, %v619
    %621 = vdwg.mxu0
    %622 = vmatpush.msra.mxu0 %v594
    %623 = vmatpush.msra.mxu0 %v592
    %624 = vmatpush.msra.mxu0 %v590
    %625 = vmatpush.msra.mxu0 %v588
    %626 = vmatpush.msra.mxu0 %v586
    %627 = vmatpush.msra.mxu0 %v584
    %628 = vmatpush.msra.mxu0 %v582
    %629 = vmatpush.msra.mxu0 %v580
    %630 = vmatpush.msra.mxu0 %v578
    %631 = vmatpush.msra.mxu0 %v576
    %632 = vmatpush.msra.mxu0 %v574
    %633 = vmatpush.msra.mxu0 %v572
    %634 = vmatpush.msra.mxu0 %v570
    %635 = vmatpush.msra.mxu0 %v568
    %636 = vmatpush.msra.mxu0 %v566
    %637 = vmatpush.msra.mxu0 %v564
    %638 = vmatmul.f32.gmra.mxu0 %v529
    %v639 = vpop.f32.mrf.mxu0
    %v640 = vadd.f32 %v620, %v639
    %641 = vdwg.mxu0
    %642 = vmatpush.msra.mxu0 %v563
    %643 = vmatpush.msra.mxu0 %v561
    %644 = vmatpush.msra.mxu0 %v559
    %645 = vmatpush.msra.mxu0 %v557
    %646 = vmatpush.msra.mxu0 %v555
    %647 = vmatpush.msra.mxu0 %v553
    %648 = vmatpush.msra.mxu0 %v551
    %649 = vmatpush.msra.mxu0 %v549
    %650 = vmatpush.msra.mxu0 %v547
    %651 = vmatpush.msra.mxu0 %v545
    %652 = vmatpush.msra.mxu0 %v543
    %653 = vmatpush.msra.mxu0 %v541
    %654 = vmatpush.msra.mxu0 %v539
    %655 = vmatpush.msra.mxu0 %v537
    %656 = vmatpush.msra.mxu0 %v535
    %657 = vmatpush.msra.mxu0 %v533
    %658 = vmatmul.f32.gmra.mxu0 %v528
    %v659 = vpop.f32.mrf.mxu0
    %v660 = vadd.f32 %v599, %v659
    %661 = vdwg.mxu0
    %662 = vmatpush.msra.mxu0 %v595
    %663 = vmatpush.msra.mxu0 %v593
    %664 = vmatpush.msra.mxu0 %v591
    %665 = vmatpush.msra.mxu0 %v589
    %666 = vmatpush.msra.mxu0 %v587
    %667 = vmatpush.msra.mxu0 %v585
    %668 = vmatpush.msra.mxu0 %v583
    %669 = vmatpush.msra.mxu0 %v581
    %670 = vmatpush.msra.mxu0 %v579
    %671 = vmatpush.msra.mxu0 %v577
    %672 = vmatpush.msra.mxu0 %v575
    %673 = vmatpush.msra.mxu0 %v573
    %674 = vmatpush.msra.mxu0 %v571
    %675 = vmatpush.msra.mxu0 %v569
    %676 = vmatpush.msra.mxu0 %v567
    %677 = vmatpush.msra.mxu0 %v565
    %678 = vmatmul.f32.gmra.mxu0 %v529
    %v679 = vpop.f32.mrf.mxu0
    %v680 = vadd.f32 %v660, %v679
    %681 = vdwg.mxu0
    %vm682 = vcmp.gt.f32.partialorder %v640, 0.0
    %vm683 = vcmp.gt.f32.partialorder %v680, 0.0
    %v684 = vmul.f32 %v640, 0.01
    %v685 = vmul.f32 %v680, 0.01
    %v686 = vsel %vm682, %v640, %v684
    %v687 = vsel %vm683, %v680, %v685
    %v688 = vld [vmem:[#allocation6] sm:$0xff]
    %v689 = vld [vmem:[#allocation6 + $0x8] sm:$0xff]
    %v690 = vld [vmem:[#allocation6 + $0x10] sm:$0xff]
    %v691 = vld [vmem:[#allocation6 + $0x18] sm:$0xff]
    %v692 = vld [vmem:[#allocation6 + $0x20] sm:$0xff]
    %v693 = vld [vmem:[#allocation6 + $0x28] sm:$0xff]
    %v694 = vld [vmem:[#allocation6 + $0x30] sm:$0xff]
    %v695 = vld [vmem:[#allocation6 + $0x38] sm:$0xff]
    %v696 = vld [vmem:[#allocation6 + $0x40] sm:$0xff]
    %v697 = vld [vmem:[#allocation6 + $0x48] sm:$0xff]
    %v698 = vld [vmem:[#allocation6 + $0x50] sm:$0xff]
    %v699 = vld [vmem:[#allocation6 + $0x58] sm:$0xff]
    %v700 = vld [vmem:[#allocation6 + $0x60] sm:$0xff]
    %v701 = vld [vmem:[#allocation6 + $0x68] sm:$0xff]
    %v702 = vld [vmem:[#allocation6 + $0x70] sm:$0xff]
    %v703 = vld [vmem:[#allocation6 + $0x78] sm:$0xff]
    %v704 = vld [vmem:[#allocation6 + $0x80] sm:$0xff]
    %v705 = vld [vmem:[#allocation6 + $0x88] sm:$0xff]
    %v706 = vld [vmem:[#allocation6 + $0x90] sm:$0xff]
    %v707 = vld [vmem:[#allocation6 + $0x98] sm:$0xff]
    %v708 = vld [vmem:[#allocation6 + $0xa0] sm:$0xff]
    %v709 = vld [vmem:[#allocation6 + $0xa8] sm:$0xff]
    %v710 = vld [vmem:[#allocation6 + $0xb0] sm:$0xff]
    %v711 = vld [vmem:[#allocation6 + $0xb8] sm:$0xff]
    %v712 = vld [vmem:[#allocation6 + $0xc0] sm:$0xff]
    %v713 = vld [vmem:[#allocation6 + $0xc8] sm:$0xff]
    %v714 = vld [vmem:[#allocation6 + $0xd0] sm:$0xff]
    %v715 = vld [vmem:[#allocation6 + $0xd8] sm:$0xff]
    %v716 = vld [vmem:[#allocation6 + $0xe0] sm:$0xff]
    %v717 = vld [vmem:[#allocation6 + $0xe8] sm:$0xff]
    %v718 = vld [vmem:[#allocation6 + $0xf0] sm:$0xff]
    %v719 = vld [vmem:[#allocation6 + $0xf8] sm:$0xff]
    %v720 = vld [vmem:[#allocation6 + $0x100] sm:$0xff]
    %v721 = vld [vmem:[#allocation6 + $0x108] sm:$0xff]
    %v722 = vld [vmem:[#allocation6 + $0x110] sm:$0xff]
    %v723 = vld [vmem:[#allocation6 + $0x118] sm:$0xff]
    %v724 = vld [vmem:[#allocation6 + $0x120] sm:$0xff]
    %v725 = vld [vmem:[#allocation6 + $0x128] sm:$0xff]
    %v726 = vld [vmem:[#allocation6 + $0x130] sm:$0xff]
    %v727 = vld [vmem:[#allocation6 + $0x138] sm:$0xff]
    %v728 = vld [vmem:[#allocation6 + $0x140] sm:$0xff]
    %v729 = vld [vmem:[#allocation6 + $0x148] sm:$0xff]
    %v730 = vld [vmem:[#allocation6 + $0x150] sm:$0xff]
    %v731 = vld [vmem:[#allocation6 + $0x158] sm:$0xff]
    %v732 = vld [vmem:[#allocation6 + $0x160] sm:$0xff]
    %v733 = vld [vmem:[#allocation6 + $0x168] sm:$0xff]
    %v734 = vld [vmem:[#allocation6 + $0x170] sm:$0xff]
    %v735 = vld [vmem:[#allocation6 + $0x178] sm:$0xff]
    %v736 = vld [vmem:[#allocation6 + $0x180] sm:$0xff]
    %v737 = vld [vmem:[#allocation6 + $0x188] sm:$0xff]
    %v738 = vld [vmem:[#allocation6 + $0x190] sm:$0xff]
    %v739 = vld [vmem:[#allocation6 + $0x198] sm:$0xff]
    %v740 = vld [vmem:[#allocation6 + $0x1a0] sm:$0xff]
    %v741 = vld [vmem:[#allocation6 + $0x1a8] sm:$0xff]
    %v742 = vld [vmem:[#allocation6 + $0x1b0] sm:$0xff]
    %v743 = vld [vmem:[#allocation6 + $0x1b8] sm:$0xff]
    %v744 = vld [vmem:[#allocation6 + $0x1c0] sm:$0xff]
    %v745 = vld [vmem:[#allocation6 + $0x1c8] sm:$0xff]
    %v746 = vld [vmem:[#allocation6 + $0x1d0] sm:$0xff]
    %v747 = vld [vmem:[#allocation6 + $0x1d8] sm:$0xff]
    %v748 = vld [vmem:[#allocation6 + $0x1e0] sm:$0xff]
    %v749 = vld [vmem:[#allocation6 + $0x1e8] sm:$0xff]
    %v750 = vld [vmem:[#allocation6 + $0x1f0] sm:$0xff]
    %v751 = vld [vmem:[#allocation6 + $0x1f8] sm:$0xff]
    %v752 = vld [vmem:[%s9] sm:$0x3]
    %v754 = vperm.slane %v752, 0
    %v755 = vperm.slane %v752, 1
    %758 = vmatpush.msra.mxu0 %v718
    %759 = vmatpush.msra.mxu0 %v716
    %760 = vmatpush.msra.mxu0 %v714
    %761 = vmatpush.msra.mxu0 %v712
    %762 = vmatpush.msra.mxu0 %v710
    %763 = vmatpush.msra.mxu0 %v708
    %764 = vmatpush.msra.mxu0 %v706
    %765 = vmatpush.msra.mxu0 %v704
    %766 = vmatpush.msra.mxu0 %v702
    %767 = vmatpush.msra.mxu0 %v700
    %768 = vmatpush.msra.mxu0 %v698
    %769 = vmatpush.msra.mxu0 %v696
    %770 = vmatpush.msra.mxu0 %v694
    %771 = vmatpush.msra.mxu0 %v692
    %772 = vmatpush.msra.mxu0 %v690
    %773 = vmatpush.msra.mxu0 %v688
    %774 = vmatmul.f32.gmra.mxu0 %v530
    %v775 = vpop.f32.mrf.mxu0
    %v776 = vadd.f32 %v754, %v775
    %777 = vdwg.mxu0
    %778 = vmatpush.msra.mxu0 %v750
    %779 = vmatpush.msra.mxu0 %v748
    %780 = vmatpush.msra.mxu0 %v746
    %781 = vmatpush.msra.mxu0 %v744
    %782 = vmatpush.msra.mxu0 %v742
    %783 = vmatpush.msra.mxu0 %v740
    %784 = vmatpush.msra.mxu0 %v738
    %785 = vmatpush.msra.mxu0 %v736
    %786 = vmatpush.msra.mxu0 %v734
    %787 = vmatpush.msra.mxu0 %v732
    %788 = vmatpush.msra.mxu0 %v730
    %789 = vmatpush.msra.mxu0 %v728
    %790 = vmatpush.msra.mxu0 %v726
    %791 = vmatpush.msra.mxu0 %v724
    %792 = vmatpush.msra.mxu0 %v722
    %793 = vmatpush.msra.mxu0 %v720
    %794 = vmatmul.f32.gmra.mxu0 %v531
    %v795 = vpop.f32.mrf.mxu0
    %v796 = vadd.f32 %v776, %v795
    %797 = vdwg.mxu0
    %798 = vmatpush.msra.mxu0 %v719
    %799 = vmatpush.msra.mxu0 %v717
    %800 = vmatpush.msra.mxu0 %v715
    %801 = vmatpush.msra.mxu0 %v713
    %802 = vmatpush.msra.mxu0 %v711
    %803 = vmatpush.msra.mxu0 %v709
    %804 = vmatpush.msra.mxu0 %v707
    %805 = vmatpush.msra.mxu0 %v705
    %806 = vmatpush.msra.mxu0 %v703
    %807 = vmatpush.msra.mxu0 %v701
    %808 = vmatpush.msra.mxu0 %v699
    %809 = vmatpush.msra.mxu0 %v697
    %810 = vmatpush.msra.mxu0 %v695
    %811 = vmatpush.msra.mxu0 %v693
    %812 = vmatpush.msra.mxu0 %v691
    %813 = vmatpush.msra.mxu0 %v689
    %814 = vmatmul.f32.gmra.mxu0 %v530
    %v815 = vpop.f32.mrf.mxu0
    %v816 = vadd.f32 %v755, %v815
    %817 = vdwg.mxu0
    %818 = vmatpush.msra.mxu0 %v751
    %819 = vmatpush.msra.mxu0 %v749
    %820 = vmatpush.msra.mxu0 %v747
    %821 = vmatpush.msra.mxu0 %v745
    %822 = vmatpush.msra.mxu0 %v743
    %823 = vmatpush.msra.mxu0 %v741
    %824 = vmatpush.msra.mxu0 %v739
    %825 = vmatpush.msra.mxu0 %v737
    %826 = vmatpush.msra.mxu0 %v735
    %827 = vmatpush.msra.mxu0 %v733
    %828 = vmatpush.msra.mxu0 %v731
    %829 = vmatpush.msra.mxu0 %v729
    %830 = vmatpush.msra.mxu0 %v727
    %831 = vmatpush.msra.mxu0 %v725
    %832 = vmatpush.msra.mxu0 %v723
    %833 = vmatpush.msra.mxu0 %v721
    %834 = vmatmul.f32.gmra.mxu0 %v531
    %v835 = vpop.f32.mrf.mxu0
    %v836 = vadd.f32 %v816, %v835
    %837 = vdwg.mxu0
    %vm838 = vcmp.gt.f32.partialorder %v796, 0.0
    %vm839 = vcmp.gt.f32.partialorder %v836, 0.0
    %v840 = vmul.f32 %v796, 0.01
    %v841 = vmul.f32 %v836, 0.01
    %v842 = vsel %vm838, %v796, %v840
    %v843 = vsel %vm839, %v836, %v841
    %v844 = vld [vmem:[%s10] sm:$0xff]
    %v845 = vld [vmem:[%s10 + $0x8] sm:$0xff]
    %v846 = vld [vmem:[%s10 + $0x10] sm:$0xff]
    %v847 = vld [vmem:[%s10 + $0x18] sm:$0xff]
    %v848 = vld [vmem:[%s10 + $0x20] sm:$0xff]
    %v849 = vld [vmem:[%s10 + $0x28] sm:$0xff]
    %v850 = vld [vmem:[%s10 + $0x30] sm:$0xff]
    %v851 = vld [vmem:[%s10 + $0x38] sm:$0xff]
    %v852 = vld [vmem:[%s10 + $0x40] sm:$0xff]
    %v853 = vld [vmem:[%s10 + $0x48] sm:$0xff]
    %v854 = vld [vmem:[%s10 + $0x50] sm:$0xff]
    %v855 = vld [vmem:[%s10 + $0x58] sm:$0xff]
    %v856 = vld [vmem:[%s10 + $0x60] sm:$0xff]
    %v857 = vld [vmem:[%s10 + $0x68] sm:$0xff]
    %v858 = vld [vmem:[%s10 + $0x70] sm:$0xff]
    %v859 = vld [vmem:[%s10 + $0x78] sm:$0xff]
    %v860 = vld [vmem:[%s10 + $0x80] sm:$0xff]
    %v861 = vld [vmem:[%s10 + $0x88] sm:$0xff]
    %v862 = vld [vmem:[%s10 + $0x90] sm:$0xff]
    %v863 = vld [vmem:[%s10 + $0x98] sm:$0xff]
    %v864 = vld [vmem:[%s10 + $0xa0] sm:$0xff]
    %v865 = vld [vmem:[%s10 + $0xa8] sm:$0xff]
    %v866 = vld [vmem:[%s10 + $0xb0] sm:$0xff]
    %v867 = vld [vmem:[%s10 + $0xb8] sm:$0xff]
    %v868 = vld [vmem:[%s10 + $0xc0] sm:$0xff]
    %v869 = vld [vmem:[%s10 + $0xc8] sm:$0xff]
    %v870 = vld [vmem:[%s10 + $0xd0] sm:$0xff]
    %v871 = vld [vmem:[%s10 + $0xd8] sm:$0xff]
    %v872 = vld [vmem:[%s10 + $0xe0] sm:$0xff]
    %v873 = vld [vmem:[%s10 + $0xe8] sm:$0xff]
    %v874 = vld [vmem:[%s10 + $0xf0] sm:$0xff]
    %v875 = vld [vmem:[%s10 + $0xf8] sm:$0xff]
    %v876 = vld [vmem:[%s10 + $0x100] sm:$0xff]
    %v877 = vld [vmem:[%s10 + $0x108] sm:$0xff]
    %v878 = vld [vmem:[%s10 + $0x110] sm:$0xff]
    %v879 = vld [vmem:[%s10 + $0x118] sm:$0xff]
    %v880 = vld [vmem:[%s10 + $0x120] sm:$0xff]
    %v881 = vld [vmem:[%s10 + $0x128] sm:$0xff]
    %v882 = vld [vmem:[%s10 + $0x130] sm:$0xff]
    %v883 = vld [vmem:[%s10 + $0x138] sm:$0xff]
    %v884 = vld [vmem:[%s10 + $0x140] sm:$0xff]
    %v885 = vld [vmem:[%s10 + $0x148] sm:$0xff]
    %v886 = vld [vmem:[%s10 + $0x150] sm:$0xff]
    %v887 = vld [vmem:[%s10 + $0x158] sm:$0xff]
    %v888 = vld [vmem:[%s10 + $0x160] sm:$0xff]
    %v889 = vld [vmem:[%s10 + $0x168] sm:$0xff]
    %v890 = vld [vmem:[%s10 + $0x170] sm:$0xff]
    %v891 = vld [vmem:[%s10 + $0x178] sm:$0xff]
    %v892 = vld [vmem:[%s10 + $0x180] sm:$0xff]
    %v893 = vld [vmem:[%s10 + $0x188] sm:$0xff]
    %v894 = vld [vmem:[%s10 + $0x190] sm:$0xff]
    %v895 = vld [vmem:[%s10 + $0x198] sm:$0xff]
    %v896 = vld [vmem:[%s10 + $0x1a0] sm:$0xff]
    %v897 = vld [vmem:[%s10 + $0x1a8] sm:$0xff]
    %v898 = vld [vmem:[%s10 + $0x1b0] sm:$0xff]
    %v899 = vld [vmem:[%s10 + $0x1b8] sm:$0xff]
    %v900 = vld [vmem:[%s10 + $0x1c0] sm:$0xff]
    %v901 = vld [vmem:[%s10 + $0x1c8] sm:$0xff]
    %v902 = vld [vmem:[%s10 + $0x1d0] sm:$0xff]
    %v903 = vld [vmem:[%s10 + $0x1d8] sm:$0xff]
    %v904 = vld [vmem:[%s10 + $0x1e0] sm:$0xff]
    %v905 = vld [vmem:[%s10 + $0x1e8] sm:$0xff]
    %v906 = vld [vmem:[%s10 + $0x1f0] sm:$0xff]
    %v907 = vld [vmem:[%s10 + $0x1f8] sm:$0xff]
    %908 = vmatpush.msra.mxu0 %v891
    %909 = vmatpush.msra.mxu0 %v890
    %910 = vmatpush.msra.mxu0 %v889
    %911 = vmatpush.msra.mxu0 %v888
    %912 = vmatpush.msra.mxu0 %v887
    %913 = vmatpush.msra.mxu0 %v886
    %914 = vmatpush.msra.mxu0 %v885
    %915 = vmatpush.msra.mxu0 %v884
    %916 = vmatpush.msra.mxu0 %v883
    %917 = vmatpush.msra.mxu0 %v882
    %918 = vmatpush.msra.mxu0 %v881
    %919 = vmatpush.msra.mxu0 %v880
    %920 = vmatpush.msra.mxu0 %v879
    %921 = vmatpush.msra.mxu0 %v878
    %922 = vmatpush.msra.mxu0 %v877
    %923 = vmatpush.msra.mxu0 %v876
    %924 = vmatmul.f32.gmra.mxu0 %v842
    %v925 = vpop.f32.mrf.mxu0
    %v926 = vadd.f32 0.0, %v925
    %927 = vdwg.mxu0
    %928 = vmatpush.msra.mxu0 %v907
    %929 = vmatpush.msra.mxu0 %v906
    %930 = vmatpush.msra.mxu0 %v905
    %931 = vmatpush.msra.mxu0 %v904
    %932 = vmatpush.msra.mxu0 %v903
    %933 = vmatpush.msra.mxu0 %v902
    %934 = vmatpush.msra.mxu0 %v901
    %935 = vmatpush.msra.mxu0 %v900
    %936 = vmatpush.msra.mxu0 %v899
    %937 = vmatpush.msra.mxu0 %v898
    %938 = vmatpush.msra.mxu0 %v897
    %939 = vmatpush.msra.mxu0 %v896
    %940 = vmatpush.msra.mxu0 %v895
    %941 = vmatpush.msra.mxu0 %v894
    %942 = vmatpush.msra.mxu0 %v893
    %943 = vmatpush.msra.mxu0 %v892
    %944 = vmatmul.f32.gmra.mxu0 %v843
    %v945 = vpop.f32.mrf.mxu0
    %v946 = vadd.f32 %v926, %v945
    %947 = vdwg.mxu0
    %948 = vmatpush.msra.mxu0 %v859
    %949 = vmatpush.msra.mxu0 %v858
    %950 = vmatpush.msra.mxu0 %v857
    %951 = vmatpush.msra.mxu0 %v856
    %952 = vmatpush.msra.mxu0 %v855
    %953 = vmatpush.msra.mxu0 %v854
    %954 = vmatpush.msra.mxu0 %v853
    %955 = vmatpush.msra.mxu0 %v852
    %956 = vmatpush.msra.mxu0 %v851
    %957 = vmatpush.msra.mxu0 %v850
    %958 = vmatpush.msra.mxu0 %v849
    %959 = vmatpush.msra.mxu0 %v848
    %960 = vmatpush.msra.mxu0 %v847
    %961 = vmatpush.msra.mxu0 %v846
    %962 = vmatpush.msra.mxu0 %v845
    %963 = vmatpush.msra.mxu0 %v844
    %964 = vmatmul.f32.gmra.mxu0 %v686
    %v965 = vpop.f32.mrf.mxu0
    %v966 = vadd.f32 %v946, %v965
    %967 = vdwg.mxu0
    %968 = vmatpush.msra.mxu0 %v875
    %969 = vmatpush.msra.mxu0 %v874
    %970 = vmatpush.msra.mxu0 %v873
    %971 = vmatpush.msra.mxu0 %v872
    %972 = vmatpush.msra.mxu0 %v871
    %973 = vmatpush.msra.mxu0 %v870
    %974 = vmatpush.msra.mxu0 %v869
    %975 = vmatpush.msra.mxu0 %v868
    %976 = vmatpush.msra.mxu0 %v867
    %977 = vmatpush.msra.mxu0 %v866
    %978 = vmatpush.msra.mxu0 %v865
    %979 = vmatpush.msra.mxu0 %v864
    %980 = vmatpush.msra.mxu0 %v863
    %981 = vmatpush.msra.mxu0 %v862
    %982 = vmatpush.msra.mxu0 %v861
    %983 = vmatpush.msra.mxu0 %v860
    %984 = vmatmul.f32.gmra.mxu0 %v687
    %v985 = vpop.f32.mrf.mxu0
    %v986 = vadd.f32 %v966, %v985
    %987 = vdwg.mxu0
    %v988 = vld [vmem:[%s11] sm:$0x1]
    %v990 = vperm.slane %v988, 0
    %v992 = vadd.f32 %v986, %v990
    %993 = vst.msk [vmem:[%s12] sm:$0xff] %vm104, %v992
    // Predicated region
    $region62: #{tpu_custom_call.1} parent=1 // pred_check
      _
    $region63: #{tpu_custom_call.1} parent=1 // pred_check_branch
      %995 = sbr.rel (0) target = $region65
    $region64: #{tpu_custom_call.1} parent=1 // pred_region
      _
    $region65: #{tpu_custom_call.1} parent=1 // pred_fallthru
      _
    // Predicated region
    $region66: #{tpu_custom_call.1} parent=1 // pred_check
      _
    $region67: #{tpu_custom_call.1} parent=1 // pred_check_branch
      %997 = sbr.rel (0) target = $region69
    $region68: #{tpu_custom_call.1} parent=1 // pred_region
      _
    $region69: #{tpu_custom_call.1} parent=1 // pred_fallthru
      _
    %998 = vsyncpa [#allocation3], 1
    %999 = vsyncpa [#allocation5], 1

</llo_original>
